<compile_context>
chip_gen: v7x
topology: tpu7x:2x2x1
jax: 0.10.0
libtpu: 0.0.40
codegen_flags: <defaults>
</compile_context>

<pallas_src>
import math
import jax
import jax.numpy as jnp
from jax.experimental import pallas as pl
from jax.experimental.pallas import tpu as pltpu


def channel_gate_kernel(x_ref, w1_ref, b1_ref, w2_ref, b2_ref, o_ref):
    # x_ref: (1, HW, C) f32 — one batch element per grid step.
    x = x_ref[...]
    hw = x.shape[1]

    # Global spatial pools: sublane-axis reductions.
    avg_pool = jnp.sum(x, axis=1) * (1.0 / float(hw))   # (1, C)
    max_pool = jnp.max(x, axis=1)                       # (1, C)

    # Fused two-branch MLP:
    #   lhs = [avg | max]                      (1, 2C)
    #   W1  = blockdiag(w0a, w1a), b1=[b0a|b1a]
    #   W2  = [w0b ; w1b],         b2=b0b+b1b
    # => att = att0 + att1 with a single Linear->ReLU->Linear chain.
    pooled = jnp.concatenate([avg_pool, max_pool], axis=-1)          # (1, 2C)
    h = jnp.dot(pooled, w1_ref[...],
                preferred_element_type=jnp.float32) + b1_ref[...]    # (1, 2h)
    h = jnp.maximum(h, 0.0)
    att = jnp.dot(h, w2_ref[...],
                  preferred_element_type=jnp.float32) + b2_ref[...]  # (1, C)

    # Sigmoid gate, broadcast over the spatial (sublane) axis.
    scale = jax.nn.sigmoid(att)                                      # (1, C)
    o_ref[...] = x * scale[:, None, :]                               # (1, HW, C)


def channel_gate(x, params):
    """x: (B, C, H, W) float32; params: dict of pre-transposed weights/biases."""
    B, C, H, W = x.shape
    HW = H * W
    hidden = params["w0a"].shape[1]

    # NCHW -> (B, HW, C): channels on lanes, spatial on sublanes.
    x3 = jnp.transpose(x, (0, 2, 3, 1)).reshape(B, HW, C)

    # Fuse the two branch MLPs (tiny; done once outside the kernel).
    w1 = jnp.zeros((2 * C, 2 * hidden), jnp.float32)
    w1 = w1.at[:C, :hidden].set(params["w0a"]).at[C:, hidden:].set(params["w1a"])
    b1 = jnp.concatenate([params["b0a"], params["b1a"]], axis=-1)     # (1, 2h)
    w2 = jnp.concatenate([params["w0b"], params["w1b"]], axis=0)      # (2h, C)
    b2 = params["b0b"] + params["b1b"]                                # (1, C)

    cost = pl.CostEstimate(
        flops=3 * B * HW * C
        + B * (2 * (2 * C) * (2 * hidden) + 2 * (2 * hidden) * C),
        transcendentals=B * C,
        bytes_accessed=(2 * B * HW * C + w1.size + b1.size + w2.size + b2.size) * 4,
    )

    def resident(shape):
        # Constant index_map -> fetched once, kept resident across grid steps.
        return pl.BlockSpec(shape, lambda b: (0, 0))

    out3 = pl.pallas_call(
        channel_gate_kernel,
        out_shape=jax.ShapeDtypeStruct((B, HW, C), x.dtype),
        grid=(B,),
        in_specs=[
            pl.BlockSpec((1, HW, C), lambda b: (b, 0, 0)),   # x: one batch per step
            resident(w1.shape), resident(b1.shape),
            resident(w2.shape), resident(b2.shape),
        ],
        out_specs=pl.BlockSpec((1, HW, C), lambda b: (b, 0, 0)),
        compiler_params=pltpu.CompilerParams(
            dimension_semantics=("parallel",),
        ),
        cost_estimate=cost,
    )(x3, w1, b1, w2, b2)

    # (B, HW, C) -> NCHW
    return jnp.transpose(out3.reshape(B, H, W, C), (0, 3, 1, 2))


def init_params(key, gate_channels, reduction_ratio=16):
    """Deterministic init mimicking nn.Linear (uniform +/- 1/sqrt(fan_in)).

    Weights are stored pre-transposed as (in_features, out_features)."""
    hidden = gate_channels // reduction_ratio
    ks = jax.random.split(key, 8)

    def linear(kw, kb, fan_in, fan_out):
        bound = 1.0 / math.sqrt(fan_in)
        w = jax.random.uniform(kw, (fan_in, fan_out), jnp.float32, -bound, bound)
        b = jax.random.uniform(kb, (1, fan_out), jnp.float32, -bound, bound)
        return w, b

    w0a, b0a = linear(ks[0], ks[1], gate_channels, hidden)
    w0b, b0b = linear(ks[2], ks[3], hidden, gate_channels)
    w1a, b1a = linear(ks[4], ks[5], gate_channels, hidden)
    w1b, b1b = linear(ks[6], ks[7], hidden, gate_channels)
    return dict(w0a=w0a, b0a=b0a, w0b=w0b, b0b=b0b,
                w1a=w1a, b1a=b1a, w1b=w1b, b1b=b1b)


def channel_gate_ref(x, p):
    """Pure-JAX reference of the PyTorch SE.ChannelGate forward
    (avg -> mlp0, max -> mlp1, sum, sigmoid, scale)."""
    avg = jnp.mean(x, axis=(2, 3))                    # (B, C)
    mx = jnp.max(x, axis=(2, 3))                      # (B, C)
    att0 = jnp.maximum(avg @ p["w0a"] + p["b0a"], 0.0) @ p["w0b"] + p["b0b"]
    att1 = jnp.maximum(mx @ p["w1a"] + p["b1a"], 0.0) @ p["w1b"] + p["b1b"]
    scale = jax.nn.sigmoid(att0 + att1)
    return x * scale[:, :, None, None]


if __name__ == "__main__":
    B, C, H, W = 2, 64, 16, 16      # gate_channels=64, reduction_ratio=16 -> hidden=4
    key = jax.random.PRNGKey(0)
    kx, kp = jax.random.split(key)
    x = jax.random.normal(kx, (B, C, H, W), dtype=jnp.float32)
    params = init_params(kp, gate_channels=C, reduction_ratio=16)

    out = channel_gate(x, params)
    out = jax.block_until_ready(out)

    ref = channel_gate_ref(x, params)
    assert out.shape == (B, C, H, W)
    assert jnp.allclose(out, ref, atol=1e-5, rtol=1e-5), "mismatch vs pure-JAX reference"

    print("KERNEL_OK")
</pallas_src>

<mosaic_0001>
module attributes {stable_mosaic.version = 11 : i64} {
  func.func @channel_gate_kernel(%arg0: i32, %arg1: memref<1x256x64xf32, #tpu.memory_space<vmem>>, %arg2: memref<128x8xf32, #tpu.memory_space<vmem>>, %arg3: memref<1x8xf32, #tpu.memory_space<vmem>>, %arg4: memref<8x64xf32, #tpu.memory_space<vmem>>, %arg5: memref<1x64xf32, #tpu.memory_space<vmem>>, %arg6: memref<1x256x64xf32, #tpu.memory_space<vmem>>) attributes {dimension_semantics = [#tpu.dimension_semantics<parallel>], iteration_bounds = array<i64: 2>, scalar_prefetch = 0 : i64, scratch_operands = 0 : i64, tpu.core_type = #tpu.core_type<tc>, window_params = [{transform_indices = @transform_0, window_bounds = array<i64: 1, 256, 64>}, {pipeline_mode = #tpu.pipeline_mode<synchronous>, transform_indices = @transform_1, window_bounds = array<i64: 128, 8>}, {pipeline_mode = #tpu.pipeline_mode<synchronous>, transform_indices = @transform_2, window_bounds = array<i64: 1, 8>}, {pipeline_mode = #tpu.pipeline_mode<synchronous>, transform_indices = @transform_3, window_bounds = array<i64: 8, 64>}, {pipeline_mode = #tpu.pipeline_mode<synchronous>, transform_indices = @transform_4, window_bounds = array<i64: 1, 64>}, {transform_indices = @transform_5, window_bounds = array<i64: 1, 256, 64>}]} {
    %c0 = arith.constant 0 : index
    %c0_0 = arith.constant 0 : index
    %c0_1 = arith.constant 0 : index
    %0 = vector.load %arg1[%c0, %c0_0, %c0_1] : memref<1x256x64xf32, #tpu.memory_space<vmem>>, vector<1x256x64xf32>
    %cst = arith.constant dense<0.000000e+00> : vector<1x64xf32>
    %1 = vector.multi_reduction <add>, %0, %cst [1] : vector<1x256x64xf32> to vector<1x64xf32>
    %cst_2 = arith.constant 3.906250e-03 : f32
    %2 = vector.broadcast %cst_2 : f32 to vector<1x64xf32>
    %3 = arith.mulf %1, %2 : vector<1x64xf32>
    %cst_3 = arith.constant dense<0xFF800000> : vector<1x64xf32>
    %4 = vector.multi_reduction <maximumf>, %0, %cst_3 [1] : vector<1x256x64xf32> to vector<1x64xf32>
    %5 = tpu.concatenate %3, %4 in 1 : vector<1x64xf32>, vector<1x64xf32> -> vector<1x128xf32>
    %c0_4 = arith.constant 0 : index
    %c0_5 = arith.constant 0 : index
    %6 = vector.load %arg2[%c0_4, %c0_5] : memref<128x8xf32, #tpu.memory_space<vmem>>, vector<128x8xf32>
    %cst_6 = arith.constant dense<0.000000e+00> : vector<1x8xf32>
    %7 = tpu.matmul %5, %6, %cst_6 {dimension_numbers = #tpu.dot_dimension_numbers<[1], [0], [0], [1], [0, 0, 1, 1], [], []>} : vector<1x128xf32>, vector<128x8xf32>, vector<1x8xf32> -> vector<1x8xf32>
    %c0_7 = arith.constant 0 : index
    %c0_8 = arith.constant 0 : index
    %8 = vector.load %arg3[%c0_7, %c0_8] : memref<1x8xf32, #tpu.memory_space<vmem>>, vector<1x8xf32>
    %9 = arith.addf %7, %8 : vector<1x8xf32>
    %cst_9 = arith.constant 0.000000e+00 : f32
    %10 = vector.broadcast %cst_9 : f32 to vector<1x8xf32>
    %11 = arith.maximumf %9, %10 : vector<1x8xf32>
    %c0_10 = arith.constant 0 : index
    %c0_11 = arith.constant 0 : index
    %12 = vector.load %arg4[%c0_10, %c0_11] : memref<8x64xf32, #tpu.memory_space<vmem>>, vector<8x64xf32>
    %cst_12 = arith.constant dense<0.000000e+00> : vector<1x64xf32>
    %13 = tpu.matmul %11, %12, %cst_12 {dimension_numbers = #tpu.dot_dimension_numbers<[1], [0], [0], [1], [0, 0, 1, 1], [], []>} : vector<1x8xf32>, vector<8x64xf32>, vector<1x64xf32> -> vector<1x64xf32>
    %c0_13 = arith.constant 0 : index
    %c0_14 = arith.constant 0 : index
    %14 = vector.load %arg5[%c0_13, %c0_14] : memref<1x64xf32, #tpu.memory_space<vmem>>, vector<1x64xf32>
    %15 = arith.addf %13, %14 : vector<1x64xf32>
    %16 = arith.negf %15 : vector<1x64xf32>
    %17 = math.exp %16 : vector<1x64xf32>
    %cst_15 = arith.constant 1.000000e+00 : f32
    %18 = vector.broadcast %cst_15 : f32 to vector<1x64xf32>
    %19 = arith.addf %18, %17 : vector<1x64xf32>
    %20 = arith.divf %18, %19 : vector<1x64xf32>
    %21 = vector.shape_cast %20 : vector<1x64xf32> to vector<1x1x64xf32>
    %22 = vector.broadcast %21 : vector<1x1x64xf32> to vector<1x256x64xf32>
    %23 = arith.mulf %0, %22 : vector<1x256x64xf32>
    %c0_16 = arith.constant 0 : index
    %c0_17 = arith.constant 0 : index
    %c0_18 = arith.constant 0 : index
    %24 = vector.load %arg6[%c0_16, %c0_17, %c0_18] : memref<1x256x64xf32, #tpu.memory_space<vmem>>, vector<1x256x64xf32>
    tpu.vector_store %arg6[%c0_16, %c0_17, %c0_18], %23 {strides = array<i32>} : memref<1x256x64xf32, #tpu.memory_space<vmem>>, vector<1x256x64xf32>,
    return
  }
  func.func @transform_0(%arg0: i32) -> (i32, i32, i32) {
    %c0_i32 = arith.constant 0 : i32
    %c0_i32_0 = arith.constant 0 : i32
    %c0_i32_1 = arith.constant 0 : i32
    return %arg0, %c0_i32, %c0_i32_0 : i32, i32, i32
  }
  func.func @transform_1(%arg0: i32) -> (i32, i32) {
    %c0_i32 = arith.constant 0 : i32
    %c0_i32_0 = arith.constant 0 : i32
    %c0_i32_1 = arith.constant 0 : i32
    return %c0_i32, %c0_i32_0 : i32, i32
  }
  func.func @transform_2(%arg0: i32) -> (i32, i32) {
    %c0_i32 = arith.constant 0 : i32
    %c0_i32_0 = arith.constant 0 : i32
    %c0_i32_1 = arith.constant 0 : i32
    return %c0_i32, %c0_i32_0 : i32, i32
  }
  func.func @transform_3(%arg0: i32) -> (i32, i32) {
    %c0_i32 = arith.constant 0 : i32
    %c0_i32_0 = arith.constant 0 : i32
    %c0_i32_1 = arith.constant 0 : i32
    return %c0_i32, %c0_i32_0 : i32, i32
  }
  func.func @transform_4(%arg0: i32) -> (i32, i32) {
    %c0_i32 = arith.constant 0 : i32
    %c0_i32_0 = arith.constant 0 : i32
    %c0_i32_1 = arith.constant 0 : i32
    return %c0_i32, %c0_i32_0 : i32, i32
  }
  func.func @transform_5(%arg0: i32) -> (i32, i32, i32) {
    %c0_i32 = arith.constant 0 : i32
    %c0_i32_0 = arith.constant 0 : i32
    %c0_i32_1 = arith.constant 0 : i32
    return %arg0, %c0_i32, %c0_i32_0 : i32, i32, i32
  }
}

</mosaic_0001>

<llo_original>
// kernel: tpu_custom_call.1
$region0: #{tpu_custom_call.1}
  #allocation0 [shape = 'u32[]', space=smem, size = 0x4, offset = 0x4, fixed_abs, tag = 'smem constant byte address 0x4 - core index']
  #allocation1 [shape = 'u32[144,128]{1,0:T(1,128)}', space=vmem, size = 0x12000, scoped, tag = 'internal scratch']
  %s0 = inlined_call_operand.vmem [shape: f32[2,256,64], index: 0, kind: input, shape index: {}]
  %s1 = inlined_call_operand.vmem [shape: f32[128,8], index: 1, kind: input, shape index: {}]
  %s2 = inlined_call_operand.vmem [shape: f32[1,8], index: 2, kind: input, shape index: {}]
  %s3 = inlined_call_operand.vmem [shape: f32[8,64], index: 3, kind: input, shape index: {}]
  %s4 = inlined_call_operand.vmem [shape: f32[1,64], index: 4, kind: input, shape index: {}]
  %s5 = inlined_call_operand.vmem [shape: f32[2,256,64], index: 5, kind: output, shape index: {}]
  %s6 = sld [smem:[#allocation0]]
  $region53: #{tpu_custom_call.1} parent=0
    _
  %s8 = ssub.s32 1, %s6
  %s9 = scalar_select 0, %s8, %s6
  loop: start=0, step=1, limit=4
  $region2: #{tpu_custom_call.1} parent=0 // loop_pre_header
    _
  $region3: #{tpu_custom_call.1} parent=0 // loop_header
    %s11 = sphi 0, %s15
    %p12 = scmp.ge.s32.totalorder %s11, 4
    %s21 = sphi 0, %s23
    %s24 = sphi 0, %s21
    %s25 = sphi 0, %s24
    %s41 = sphi 0, %s25
    %s45 = sphi 0, %s45
    %s47 = sphi 0, %s45
    %s48 = sphi 0, %s47
    %s62 = sphi 0, %s48
    %s66 = sphi 0, %s66
    %s68 = sphi 0, %s66
    %s69 = sphi 0, %s68
    %s83 = sphi 0, %s69
    %s87 = sphi 0, %s87
    %s89 = sphi 0, %s87
    %s90 = sphi 0, %s89
    %s104 = sphi 0, %s90
    %s108 = sphi 0, %s108
    %s110 = sphi 0, %s108
    %s111 = sphi 0, %s110
    %s125 = sphi 0, %s111
    %s131 = sphi 0, %s133
    %s134 = sphi 0, %s131
    %s135 = sphi 0, %s134
    %s151 = sphi 0, %s135
  $region4: #{tpu_custom_call.1} parent=0 // loop_header_branch
    %14 = sbr.rel (%p12) target = $region8
  $region5: #{tpu_custom_call.1} parent=0 // loop_body
    %s16 = ssub.s32 %s11, 1
    %s17 = ssub.s32 %s11, 2
    %s18 = sadd.s32 %s11, 1
    %s19 = ssub.s32 %s11, %s18
    %p20 = scmp.eq.s32.totalorder %s19, 0
    %s22 = sadd.s32 %s21, 1
    %s23 = scalar_select %p20, %s21, %s22
    %p26 = pneg %p20
    %p27 = scmp.eq.s32.totalorder %s11, 1
    %p28 = por %p26, %p27
    %p29 = scmp.ne.s32.totalorder %s21, %s24
    %p30 = scmp.eq.s32.totalorder %s11, 0
    %p31 = por %p29, %p30
    %p32 = scmp.ne.s32.totalorder %s21, %s24
    %p33 = scmp.eq.s32.totalorder %s16, 1
    %p34 = por %p32, %p33
    %p35 = scmp.ne.s32.totalorder %s24, %s25
    %p36 = scmp.eq.s32.totalorder %s16, 0
    %p37 = por %p35, %p36
    %p38 = scmp.ne.s32.totalorder %s24, %s25
    %p39 = scmp.eq.s32.totalorder %s17, 1
    %p40 = por %p38, %p39
    %p42 = scmp.ne.s32.totalorder %s25, %s41
    %p43 = scmp.eq.s32.totalorder %s17, 0
    %p44 = por %p42, %p43
    %s46 = sadd.s32 %s45, 1
    %p49 = scmp.eq.s32.totalorder %s11, 1
    %p50 = scmp.ne.s32.totalorder %s45, %s47
    %p51 = scmp.eq.s32.totalorder %s11, 0
    %p52 = por %p50, %p51
    %p53 = scmp.ne.s32.totalorder %s45, %s47
    %p54 = scmp.eq.s32.totalorder %s16, 1
    %p55 = por %p53, %p54
    %p56 = scmp.ne.s32.totalorder %s47, %s48
    %p57 = scmp.eq.s32.totalorder %s16, 0
    %p58 = por %p56, %p57
    %p59 = scmp.ne.s32.totalorder %s47, %s48
    %p60 = scmp.eq.s32.totalorder %s17, 1
    %p61 = por %p59, %p60
    %p63 = scmp.ne.s32.totalorder %s48, %s62
    %p64 = scmp.eq.s32.totalorder %s17, 0
    %p65 = por %p63, %p64
    %s67 = sadd.s32 %s66, 1
    %p70 = scmp.eq.s32.totalorder %s11, 1
    %p71 = scmp.ne.s32.totalorder %s66, %s68
    %p72 = scmp.eq.s32.totalorder %s11, 0
    %p73 = por %p71, %p72
    %p74 = scmp.ne.s32.totalorder %s66, %s68
    %p75 = scmp.eq.s32.totalorder %s16, 1
    %p76 = por %p74, %p75
    %p77 = scmp.ne.s32.totalorder %s68, %s69
    %p78 = scmp.eq.s32.totalorder %s16, 0
    %p79 = por %p77, %p78
    %p80 = scmp.ne.s32.totalorder %s68, %s69
    %p81 = scmp.eq.s32.totalorder %s17, 1
    %p82 = por %p80, %p81
    %p84 = scmp.ne.s32.totalorder %s69, %s83
    %p85 = scmp.eq.s32.totalorder %s17, 0
    %p86 = por %p84, %p85
    %s88 = sadd.s32 %s87, 1
    %p91 = scmp.eq.s32.totalorder %s11, 1
    %p92 = scmp.ne.s32.totalorder %s87, %s89
    %p93 = scmp.eq.s32.totalorder %s11, 0
    %p94 = por %p92, %p93
    %p95 = scmp.ne.s32.totalorder %s87, %s89
    %p96 = scmp.eq.s32.totalorder %s16, 1
    %p97 = por %p95, %p96
    %p98 = scmp.ne.s32.totalorder %s89, %s90
    %p99 = scmp.eq.s32.totalorder %s16, 0
    %p100 = por %p98, %p99
    %p101 = scmp.ne.s32.totalorder %s89, %s90
    %p102 = scmp.eq.s32.totalorder %s17, 1
    %p103 = por %p101, %p102
    %p105 = scmp.ne.s32.totalorder %s90, %s104
    %p106 = scmp.eq.s32.totalorder %s17, 0
    %p107 = por %p105, %p106
    %s109 = sadd.s32 %s108, 1
    %p112 = scmp.eq.s32.totalorder %s11, 1
    %p113 = scmp.ne.s32.totalorder %s108, %s110
    %p114 = scmp.eq.s32.totalorder %s11, 0
    %p115 = por %p113, %p114
    %p116 = scmp.ne.s32.totalorder %s108, %s110
    %p117 = scmp.eq.s32.totalorder %s16, 1
    %p118 = por %p116, %p117
    %p119 = scmp.ne.s32.totalorder %s110, %s111
    %p120 = scmp.eq.s32.totalorder %s16, 0
    %p121 = por %p119, %p120
    %p122 = scmp.ne.s32.totalorder %s110, %s111
    %p123 = scmp.eq.s32.totalorder %s17, 1
    %p124 = por %p122, %p123
    %p126 = scmp.ne.s32.totalorder %s111, %s125
    %p127 = scmp.eq.s32.totalorder %s17, 0
    %p128 = por %p126, %p127
    %s129 = ssub.s32 %s11, %s18
    %p130 = scmp.eq.s32.totalorder %s129, 0
    %s132 = sadd.s32 %s131, 1
    %s133 = scalar_select %p130, %s131, %s132
    %p136 = pneg %p130
    %p137 = scmp.eq.s32.totalorder %s11, 1
    %p138 = por %p136, %p137
    %p139 = scmp.ne.s32.totalorder %s131, %s134
    %p140 = scmp.eq.s32.totalorder %s11, 0
    %p141 = por %p139, %p140
    %p142 = scmp.ne.s32.totalorder %s131, %s134
    %p143 = scmp.eq.s32.totalorder %s16, 1
    %p144 = por %p142, %p143
    %p145 = scmp.ne.s32.totalorder %s134, %s135
    %p146 = scmp.eq.s32.totalorder %s16, 0
    %p147 = por %p145, %p146
    %p148 = scmp.ne.s32.totalorder %s134, %s135
    %p149 = scmp.eq.s32.totalorder %s17, 1
    %p150 = por %p148, %p149
    %p152 = scmp.ne.s32.totalorder %s135, %s151
    %p153 = scmp.eq.s32.totalorder %s17, 0
    %p154 = por %p152, %p153
    %p155 = scmp.le.s32.totalorder 1, %s11
    %p156 = scmp.lt.s32.totalorder %s11, 3
    %p157 = pnand %p155, %p156
    %p158 = pneg %p157
    // Predicated region
    $region9: #{tpu_custom_call.1} parent=5 // pred_check
      _
    $region10: #{tpu_custom_call.1} parent=5 // pred_check_branch
      %160 = sbr.rel (%p157) target = $region12
    $region11: #{tpu_custom_call.1} parent=5 // pred_region
      %s161 = ssub.s32 %s11, 1
      // Predicated region
      $region13: #{tpu_custom_call.1} parent=11 // pred_check
        %p162 = pneg %p58
      $region14: #{tpu_custom_call.1} parent=11 // pred_check_branch
        %164 = sbr.rel (%p162) target = $region16
      $region15: #{tpu_custom_call.1} parent=11 // pred_region
        _
      $region16: #{tpu_custom_call.1} parent=11 // pred_fallthru
        _
      // Predicated region
      $region17: #{tpu_custom_call.1} parent=11 // pred_check
        %p165 = pneg %p79
      $region18: #{tpu_custom_call.1} parent=11 // pred_check_branch
        %167 = sbr.rel (%p165) target = $region20
      $region19: #{tpu_custom_call.1} parent=11 // pred_region
        _
      $region20: #{tpu_custom_call.1} parent=11 // pred_fallthru
        _
      // Predicated region
      $region21: #{tpu_custom_call.1} parent=11 // pred_check
        %p168 = pneg %p100
      $region22: #{tpu_custom_call.1} parent=11 // pred_check_branch
        %170 = sbr.rel (%p168) target = $region24
      $region23: #{tpu_custom_call.1} parent=11 // pred_region
        _
      $region24: #{tpu_custom_call.1} parent=11 // pred_fallthru
        _
      // Predicated region
      $region25: #{tpu_custom_call.1} parent=11 // pred_check
        %p171 = pneg %p121
      $region26: #{tpu_custom_call.1} parent=11 // pred_check_branch
        %173 = sbr.rel (%p171) target = $region28
      $region27: #{tpu_custom_call.1} parent=11 // pred_region
        _
      $region28: #{tpu_custom_call.1} parent=11 // pred_fallthru
        _
    $region12: #{tpu_custom_call.1} parent=5 // pred_fallthru
      _
    %p174 = scmp.lt.s32.totalorder %s11, 2
    // Predicated region
    $region29: #{tpu_custom_call.1} parent=5 // pred_check
      %p175 = pneg %p174
    $region30: #{tpu_custom_call.1} parent=5 // pred_check_branch
      %177 = sbr.rel (%p175) target = $region32
    $region31: #{tpu_custom_call.1} parent=5 // pred_region
      // Predicated region
      $region33: #{tpu_custom_call.1} parent=31 // pred_check
        %p178 = pneg %p31
      $region34: #{tpu_custom_call.1} parent=31 // pred_check_branch
        %180 = sbr.rel (%p178) target = $region36
      $region35: #{tpu_custom_call.1} parent=31 // pred_region
        %p181 = scmp.lt.s32.totalorder %s11, 1
        %s182 = scalar_select %p181, %s11, 1
        %s183 = smul.addr %s182, 32
        %s184 = smul.addr %s183, 8
        %s185 = scalar_lea.vmem %s0, %s184
      $region36: #{tpu_custom_call.1} parent=31 // pred_fallthru
        _
    $region32: #{tpu_custom_call.1} parent=5 // pred_fallthru
      _
    %p186 = scmp.le.s32.totalorder 1, %s11
    %p187 = scmp.lt.s32.totalorder %s11, 3
    %p188 = pnand %p186, %p187
    %p189 = pneg %p188
    // Predicated region
    $region37: #{tpu_custom_call.1} parent=5 // pred_check
      _
    $region38: #{tpu_custom_call.1} parent=5 // pred_check_branch
      %191 = sbr.rel (%p188) target = $region40
    $region39: #{tpu_custom_call.1} parent=5 // pred_region
      %s192 = ssub.s32 %s11, 1
      %p193 = scmp.lt.s32.totalorder %s16, 1
      %s194 = scalar_select %p193, %s16, 1
      %s195 = smul.addr %s194, 32
      %s196 = smul.addr %s195, 8
      %s197 = scalar_lea.vmem %s0, %s196
      %p198 = pneg %p37
      %p199 = pneg %p34
      %p200 = pneg %p58
      %p201 = pneg %p55
      %p202 = pneg %p79
      %p203 = pneg %p76
      %p204 = pneg %p100
      %p205 = pneg %p97
      %p206 = pneg %p121
      %p207 = pneg %p118
      %p208 = pneg %p147
      %p209 = pneg %p144
      %p210 = scmp.lt.s32.totalorder %s16, 1
      %s211 = scalar_select %p210, %s16, 1
      %s212 = smul.addr %s211, 32
      %s213 = smul.addr %s212, 8
      %s214 = scalar_lea.vmem %s5, %s213
      %p215 = scmp.lt.s32.totalorder %s16, 1
      %s216 = scalar_select %p215, %s16, 1
      %s217 = smul.addr %s216, 32
      %s218 = smul.addr %s217, 8
      %s219 = scalar_lea.vmem %s0, %s218
      %p220 = scmp.lt.s32.totalorder %s16, 1
      %s221 = scalar_select %p220, %s16, 1
      %s222 = smul.addr %s221, 32
      %s223 = smul.addr %s222, 8
      %s224 = scalar_lea.vmem %s5, %s223
      %v225 = vld [vmem:[%s219] sm:$0xff]
      %v226 = vld [vmem:[%s219 + $0x8] sm:$0xff]
      %v227 = vld [vmem:[%s219 + $0x10] sm:$0xff]
      %v228 = vld [vmem:[%s219 + $0x18] sm:$0xff]
      %v229 = vld [vmem:[%s219 + $0x20] sm:$0xff]
      %v230 = vld [vmem:[%s219 + $0x28] sm:$0xff]
      %v231 = vld [vmem:[%s219 + $0x30] sm:$0xff]
      %v232 = vld [vmem:[%s219 + $0x38] sm:$0xff]
      %v233 = vld [vmem:[%s219 + $0x40] sm:$0xff]
      %v234 = vld [vmem:[%s219 + $0x48] sm:$0xff]
      %v235 = vld [vmem:[%s219 + $0x50] sm:$0xff]
      %v236 = vld [vmem:[%s219 + $0x58] sm:$0xff]
      %v237 = vld [vmem:[%s219 + $0x60] sm:$0xff]
      %v238 = vld [vmem:[%s219 + $0x68] sm:$0xff]
      %v239 = vld [vmem:[%s219 + $0x70] sm:$0xff]
      %v240 = vld [vmem:[%s219 + $0x78] sm:$0xff]
      %v241 = vld [vmem:[%s219 + $0x80] sm:$0xff]
      %v242 = vld [vmem:[%s219 + $0x88] sm:$0xff]
      %v243 = vld [vmem:[%s219 + $0x90] sm:$0xff]
      %v244 = vld [vmem:[%s219 + $0x98] sm:$0xff]
      %v245 = vld [vmem:[%s219 + $0xa0] sm:$0xff]
      %v246 = vld [vmem:[%s219 + $0xa8] sm:$0xff]
      %v247 = vld [vmem:[%s219 + $0xb0] sm:$0xff]
      %v248 = vld [vmem:[%s219 + $0xb8] sm:$0xff]
      %v249 = vld [vmem:[%s219 + $0xc0] sm:$0xff]
      %v250 = vld [vmem:[%s219 + $0xc8] sm:$0xff]
      %v251 = vld [vmem:[%s219 + $0xd0] sm:$0xff]
      %v252 = vld [vmem:[%s219 + $0xd8] sm:$0xff]
      %v253 = vld [vmem:[%s219 + $0xe0] sm:$0xff]
      %v254 = vld [vmem:[%s219 + $0xe8] sm:$0xff]
      %v255 = vld [vmem:[%s219 + $0xf0] sm:$0xff]
      %v256 = vld [vmem:[%s219 + $0xf8] sm:$0xff]
      %vm257 = vcmask 523264
      %v258 = vsel %vm257, %v225, 0.0
      %v259 = vsel %vm257, %v226, 0.0
      %v260 = vadd.f32 %v258, %v259
      %v261 = vsel %vm257, %v227, 0.0
      %v262 = vadd.f32 %v260, %v261
      %v263 = vsel %vm257, %v228, 0.0
      %v264 = vadd.f32 %v262, %v263
      %v265 = vsel %vm257, %v229, 0.0
      %v266 = vadd.f32 %v264, %v265
      %v267 = vsel %vm257, %v230, 0.0
      %v268 = vadd.f32 %v266, %v267
      %v269 = vsel %vm257, %v231, 0.0
      %v270 = vadd.f32 %v268, %v269
      %v271 = vsel %vm257, %v232, 0.0
      %v272 = vadd.f32 %v270, %v271
      %v273 = vsel %vm257, %v233, 0.0
      %v274 = vadd.f32 %v272, %v273
      %v275 = vsel %vm257, %v234, 0.0
      %v276 = vadd.f32 %v274, %v275
      %v277 = vsel %vm257, %v235, 0.0
      %v278 = vadd.f32 %v276, %v277
      %v279 = vsel %vm257, %v236, 0.0
      %v280 = vadd.f32 %v278, %v279
      %v281 = vsel %vm257, %v237, 0.0
      %v282 = vadd.f32 %v280, %v281
      %v283 = vsel %vm257, %v238, 0.0
      %v284 = vadd.f32 %v282, %v283
      %v285 = vsel %vm257, %v239, 0.0
      %v286 = vadd.f32 %v284, %v285
      %v287 = vsel %vm257, %v240, 0.0
      %v288 = vadd.f32 %v286, %v287
      %v289 = vsel %vm257, %v241, 0.0
      %v290 = vadd.f32 %v288, %v289
      %v291 = vsel %vm257, %v242, 0.0
      %v292 = vadd.f32 %v290, %v291
      %v293 = vsel %vm257, %v243, 0.0
      %v294 = vadd.f32 %v292, %v293
      %v295 = vsel %vm257, %v244, 0.0
      %v296 = vadd.f32 %v294, %v295
      %v297 = vsel %vm257, %v245, 0.0
      %v298 = vadd.f32 %v296, %v297
      %v299 = vsel %vm257, %v246, 0.0
      %v300 = vadd.f32 %v298, %v299
      %v301 = vsel %vm257, %v247, 0.0
      %v302 = vadd.f32 %v300, %v301
      %v303 = vsel %vm257, %v248, 0.0
      %v304 = vadd.f32 %v302, %v303
      %v305 = vsel %vm257, %v249, 0.0
      %v306 = vadd.f32 %v304, %v305
      %v307 = vsel %vm257, %v250, 0.0
      %v308 = vadd.f32 %v306, %v307
      %v309 = vsel %vm257, %v251, 0.0
      %v310 = vadd.f32 %v308, %v309
      %v311 = vsel %vm257, %v252, 0.0
      %v312 = vadd.f32 %v310, %v311
      %v313 = vsel %vm257, %v253, 0.0
      %v314 = vadd.f32 %v312, %v313
      %v315 = vsel %vm257, %v254, 0.0
      %v316 = vadd.f32 %v314, %v315
      %v317 = vsel %vm257, %v255, 0.0
      %v318 = vadd.f32 %v316, %v317
      %v319 = vsel %vm257, %v256, 0.0
      %v320 = vadd.f32 %v318, %v319
      %v321 = vrot.slane %v320, 4
      %v322 = vadd.f32 %v320, %v321
      %v323 = vrot.slane %v322, 2
      %v324 = vadd.f32 %v322, %v323
      %v325 = vrot.slane %v324, 1
      %v326 = vadd.f32 %v324, %v325
      %v327 = vmul.f32 %v326, 0.00390625
      %v328 = vsel %vm257, %v225, -inf
      %v329 = vsel %vm257, %v226, -inf
      %v330 = vsel %vm257, %v227, -inf
      %v331 = vsel %vm257, %v228, -inf
      %v332 = vsel %vm257, %v229, -inf
      %v333 = vmax.f32 %v328, %v332
      %v334 = vsel %vm257, %v230, -inf
      %v335 = vmax.f32 %v329, %v334
      %v336 = vsel %vm257, %v231, -inf
      %v337 = vmax.f32 %v330, %v336
      %v338 = vsel %vm257, %v232, -inf
      %v339 = vmax.f32 %v331, %v338
      %v340 = vsel %vm257, %v233, -inf
      %v341 = vmax.f32 %v333, %v340
      %v342 = vsel %vm257, %v234, -inf
      %v343 = vmax.f32 %v335, %v342
      %v344 = vsel %vm257, %v235, -inf
      %v345 = vmax.f32 %v337, %v344
      %v346 = vsel %vm257, %v236, -inf
      %v347 = vmax.f32 %v339, %v346
      %v348 = vsel %vm257, %v237, -inf
      %v349 = vmax.f32 %v341, %v348
      %v350 = vsel %vm257, %v238, -inf
      %v351 = vmax.f32 %v343, %v350
      %v352 = vsel %vm257, %v239, -inf
      %v353 = vmax.f32 %v345, %v352
      %v354 = vsel %vm257, %v240, -inf
      %v355 = vmax.f32 %v347, %v354
      %v356 = vsel %vm257, %v241, -inf
      %v357 = vmax.f32 %v349, %v356
      %v358 = vsel %vm257, %v242, -inf
      %v359 = vmax.f32 %v351, %v358
      %v360 = vsel %vm257, %v243, -inf
      %v361 = vmax.f32 %v353, %v360
      %v362 = vsel %vm257, %v244, -inf
      %v363 = vmax.f32 %v355, %v362
      %v364 = vsel %vm257, %v245, -inf
      %v365 = vmax.f32 %v357, %v364
      %v366 = vsel %vm257, %v246, -inf
      %v367 = vmax.f32 %v359, %v366
      %v368 = vsel %vm257, %v247, -inf
      %v369 = vmax.f32 %v361, %v368
      %v370 = vsel %vm257, %v248, -inf
      %v371 = vmax.f32 %v363, %v370
      %v372 = vsel %vm257, %v249, -inf
      %v373 = vmax.f32 %v365, %v372
      %v374 = vsel %vm257, %v250, -inf
      %v375 = vmax.f32 %v367, %v374
      %v376 = vsel %vm257, %v251, -inf
      %v377 = vmax.f32 %v369, %v376
      %v378 = vsel %vm257, %v252, -inf
      %v379 = vmax.f32 %v371, %v378
      %v380 = vsel %vm257, %v253, -inf
      %v381 = vmax.f32 %v373, %v380
      %v382 = vsel %vm257, %v254, -inf
      %v383 = vmax.f32 %v375, %v382
      %v384 = vsel %vm257, %v255, -inf
      %v385 = vmax.f32 %v377, %v384
      %v386 = vsel %vm257, %v256, -inf
      %v387 = vmax.f32 %v379, %v386
      %v388 = vmax.f32 %v381, %v383
      %v389 = vmax.f32 %v385, %v387
      %v390 = vmax.f32 %v388, %v389
      %v391 = vrot.slane %v390, 4
      %v392 = vmax.f32 %v390, %v391
      %v393 = vrot.slane %v392, 2
      %v394 = vmax.f32 %v392, %v393
      %v395 = vrot.slane %v394, 1
      %v396 = vmax.f32 %v394, %v395
      %398 = vrot.lane.b32.xlu0 %v396, 64
      %v399 = vpop.permute.xlu0 %398
      %v401 = vsel %vm257, %v327, %v399
      %v402 = vld [vmem:[%s1] sm:$0xff]
      %v403 = vld [vmem:[%s1 + $0x8] sm:$0xff]
      %v404 = vld [vmem:[%s1 + $0x10] sm:$0xff]
      %v405 = vld [vmem:[%s1 + $0x18] sm:$0xff]
      %v406 = vld [vmem:[%s1 + $0x20] sm:$0xff]
      %v407 = vld [vmem:[%s1 + $0x28] sm:$0xff]
      %v408 = vld [vmem:[%s1 + $0x30] sm:$0xff]
      %v409 = vld [vmem:[%s1 + $0x38] sm:$0xff]
      %v410 = vld [vmem:[%s1 + $0x40] sm:$0xff]
      %v411 = vld [vmem:[%s1 + $0x48] sm:$0xff]
      %v412 = vld [vmem:[%s1 + $0x50] sm:$0xff]
      %v413 = vld [vmem:[%s1 + $0x58] sm:$0xff]
      %v414 = vld [vmem:[%s1 + $0x60] sm:$0xff]
      %v415 = vld [vmem:[%s1 + $0x68] sm:$0xff]
      %v416 = vld [vmem:[%s1 + $0x70] sm:$0xff]
      %v417 = vld [vmem:[%s1 + $0x78] sm:$0xff]
      %v418 = vld [vmem:[%s2] sm:$0x1]
      %419 = vmatprep.subr.mxu0 0.0
      %420 = vmatpush1.msra.mxu0 %v402
      %421 = vmatprep.subr.mxu0 0.0
      %422 = vmatpush1.msra.mxu0 %v403
      %423 = vmatprep.subr.mxu0 0.0
      %424 = vmatpush1.msra.mxu0 %v404
      %425 = vmatprep.subr.mxu0 0.0
      %426 = vmatpush1.msra.mxu0 %v405
      %427 = vmatprep.subr.mxu0 0.0
      %428 = vmatpush1.msra.mxu0 %v406
      %429 = vmatprep.subr.mxu0 0.0
      %430 = vmatpush1.msra.mxu0 %v407
      %431 = vmatprep.subr.mxu0 0.0
      %432 = vmatpush1.msra.mxu0 %v408
      %433 = vmatprep.subr.mxu0 0.0
      %434 = vmatpush1.msra.mxu0 %v409
      %435 = vmatprep.subr.mxu0 0.0
      %436 = vmatpush1.msra.mxu0 %v410
      %437 = vmatprep.subr.mxu0 0.0
      %438 = vmatpush1.msra.mxu0 %v411
      %439 = vmatprep.subr.mxu0 0.0
      %440 = vmatpush1.msra.mxu0 %v412
      %441 = vmatprep.subr.mxu0 0.0
      %442 = vmatpush1.msra.mxu0 %v413
      %443 = vmatprep.subr.mxu0 0.0
      %444 = vmatpush1.msra.mxu0 %v414
      %445 = vmatprep.subr.mxu0 0.0
      %446 = vmatpush1.msra.mxu0 %v415
      %447 = vmatprep.subr.mxu0 0.0
      %448 = vmatpush1.msra.mxu0 %v416
      %449 = vmatprep.subr.mxu0 0.0
      %450 = vmatpush1.msra.mxu0 %v417
      %451 = vmatprep.subr.mxu0 0.0
      %452 = vmatpush1.msra.mxu0 0.0
      %453 = vmatprep.subr.mxu0 0.0
      %454 = vmatpush1.msra.mxu0 0.0
      %455 = vmatprep.subr.mxu0 0.0
      %456 = vmatpush1.msra.mxu0 0.0
      %457 = vmatprep.subr.mxu0 0.0
      %458 = vmatpush1.msra.mxu0 0.0
      %459 = vmatprep.subr.mxu0 0.0
      %460 = vmatpush1.msra.mxu0 0.0
      %461 = vmatprep.subr.mxu0 0.0
      %462 = vmatpush1.msra.mxu0 0.0
      %463 = vmatprep.subr.mxu0 0.0
      %464 = vmatpush1.msra.mxu0 0.0
      %465 = vmatprep.subr.mxu0 0.0
      %466 = vmatpush1.msra.mxu0 0.0
      %467 = vmatprep.subr.mxu0 0.0
      %468 = vmatpush1.msra.mxu0 0.0
      %469 = vmatprep.subr.mxu0 0.0
      %470 = vmatpush1.msra.mxu0 0.0
      %471 = vmatprep.subr.mxu0 0.0
      %472 = vmatpush1.msra.mxu0 0.0
      %473 = vmatprep.subr.mxu0 0.0
      %474 = vmatpush1.msra.mxu0 0.0
      %475 = vmatprep.subr.mxu0 0.0
      %476 = vmatpush1.msra.mxu0 0.0
      %477 = vmatprep.subr.mxu0 0.0
      %478 = vmatpush1.msra.mxu0 0.0
      %479 = vmatprep.subr.mxu0 0.0
      %480 = vmatpush1.msra.mxu0 0.0
      %481 = vmatprep.subr.mxu0 0.0
      %482 = vmatpush1.msra.mxu0 0.0
      %483 = vmatprep.mubr.f32.mxu0 0.0
      %484 = vmatmul.mubr.f32.gmra.mrb[0].mxu0 %v401
      %v485 = vpop.f32.mrb[0].mxu0
      %v486 = vadd.f32 %v418, %v485
      %v487 = vpop.f32.mrb[0].mxu0
      %488 = vdwg.mxu0
      %v489 = vmax.f32 %v486, 0.0
      %v490 = vld [vmem:[%s3] sm:$0xff]
      %v491 = vld [vmem:[%s4] sm:$0x1]
      %vm492 = vcmask 64512
      %v494 = vsel %vm492, %v489, 0
      %496 = vmatprep.subr.mxu0 0.0
      %497 = vmatpush1.msra.mxu0 %v490
      %498 = vmatprep.subr.mxu0 0.0
      %499 = vmatpush1.msra.mxu0 0.0
      %500 = vmatprep.subr.mxu0 0.0
      %501 = vmatpush1.msra.mxu0 0.0
      %502 = vmatprep.subr.mxu0 0.0
      %503 = vmatpush1.msra.mxu0 0.0
      %504 = vmatprep.subr.mxu0 0.0
      %505 = vmatpush1.msra.mxu0 0.0
      %506 = vmatprep.subr.mxu0 0.0
      %507 = vmatpush1.msra.mxu0 0.0
      %508 = vmatprep.subr.mxu0 0.0
      %509 = vmatpush1.msra.mxu0 0.0
      %510 = vmatprep.subr.mxu0 0.0
      %511 = vmatpush1.msra.mxu0 0.0
      %512 = vmatprep.subr.mxu0 0.0
      %513 = vmatpush1.msra.mxu0 0.0
      %514 = vmatprep.subr.mxu0 0.0
      %515 = vmatpush1.msra.mxu0 0.0
      %516 = vmatprep.subr.mxu0 0.0
      %517 = vmatpush1.msra.mxu0 0.0
      %518 = vmatprep.subr.mxu0 0.0
      %519 = vmatpush1.msra.mxu0 0.0
      %520 = vmatprep.subr.mxu0 0.0
      %521 = vmatpush1.msra.mxu0 0.0
      %522 = vmatprep.subr.mxu0 0.0
      %523 = vmatpush1.msra.mxu0 0.0
      %524 = vmatprep.subr.mxu0 0.0
      %525 = vmatpush1.msra.mxu0 0.0
      %526 = vmatprep.subr.mxu0 0.0
      %527 = vmatpush1.msra.mxu0 0.0
      %528 = vmatprep.subr.mxu0 0.0
      %529 = vmatpush1.msra.mxu0 0.0
      %530 = vmatprep.subr.mxu0 0.0
      %531 = vmatpush1.msra.mxu0 0.0
      %532 = vmatprep.subr.mxu0 0.0
      %533 = vmatpush1.msra.mxu0 0.0
      %534 = vmatprep.subr.mxu0 0.0
      %535 = vmatpush1.msra.mxu0 0.0
      %536 = vmatprep.subr.mxu0 0.0
      %537 = vmatpush1.msra.mxu0 0.0
      %538 = vmatprep.subr.mxu0 0.0
      %539 = vmatpush1.msra.mxu0 0.0
      %540 = vmatprep.subr.mxu0 0.0
      %541 = vmatpush1.msra.mxu0 0.0
      %542 = vmatprep.subr.mxu0 0.0
      %543 = vmatpush1.msra.mxu0 0.0
      %544 = vmatprep.subr.mxu0 0.0
      %545 = vmatpush1.msra.mxu0 0.0
      %546 = vmatprep.subr.mxu0 0.0
      %547 = vmatpush1.msra.mxu0 0.0
      %548 = vmatprep.subr.mxu0 0.0
      %549 = vmatpush1.msra.mxu0 0.0
      %550 = vmatprep.subr.mxu0 0.0
      %551 = vmatpush1.msra.mxu0 0.0
      %552 = vmatprep.subr.mxu0 0.0
      %553 = vmatpush1.msra.mxu0 0.0
      %554 = vmatprep.subr.mxu0 0.0
      %555 = vmatpush1.msra.mxu0 0.0
      %556 = vmatprep.subr.mxu0 0.0
      %557 = vmatpush1.msra.mxu0 0.0
      %558 = vmatprep.subr.mxu0 0.0
      %559 = vmatpush1.msra.mxu0 0.0
      %560 = vmatprep.mubr.f32.mxu0 0.0
      %561 = vmatmul.mubr.f32.gmra.mrb[0].mxu0 %v494
      %v562 = vpop.f32.mrb[0].mxu0
      %v563 = vadd.f32 %v491, %v562
      %v564 = vpop.f32.mrb[0].mxu0
      %565 = vdwg.mxu0
      %v566 = vxor.u32 %v563, 2147483648
      %v567 = vmul.f32 %v566, 1.442695
      %v568 = vpow.pop %v567
      %v569 = vadd.f32 %v568, 1.0
      %v570 = vrcp.pop %v569
      %v571 = vmul.f32 1.0, %v570
      %v572 = vlaneseq
      %v573 = vshrl.u32 %v572, 7
      %v574 = vsub.s32 0, %v573
      %v575 = vrot.slane %v571, %v574
      %v576 = vmul.f32 %v225, %v575
      %v577 = vmul.f32 %v226, %v575
      %v578 = vmul.f32 %v227, %v575
      %v579 = vmul.f32 %v228, %v575
      %v580 = vmul.f32 %v229, %v575
      %v581 = vmul.f32 %v230, %v575
      %v582 = vmul.f32 %v231, %v575
      %v583 = vmul.f32 %v232, %v575
      %v584 = vmul.f32 %v233, %v575
      %v585 = vmul.f32 %v234, %v575
      %v586 = vmul.f32 %v235, %v575
      %v587 = vmul.f32 %v236, %v575
      %v588 = vmul.f32 %v237, %v575
      %v589 = vmul.f32 %v238, %v575
      %v590 = vmul.f32 %v239, %v575
      %v591 = vmul.f32 %v240, %v575
      %v592 = vmul.f32 %v241, %v575
      %v593 = vmul.f32 %v242, %v575
      %v594 = vmul.f32 %v243, %v575
      %v595 = vmul.f32 %v244, %v575
      %v596 = vmul.f32 %v245, %v575
      %v597 = vmul.f32 %v246, %v575
      %v598 = vmul.f32 %v247, %v575
      %v599 = vmul.f32 %v248, %v575
      %v600 = vmul.f32 %v249, %v575
      %v601 = vmul.f32 %v250, %v575
      %v602 = vmul.f32 %v251, %v575
      %v603 = vmul.f32 %v252, %v575
      %v604 = vmul.f32 %v253, %v575
      %v605 = vmul.f32 %v254, %v575
      %v606 = vmul.f32 %v255, %v575
      %v607 = vmul.f32 %v256, %v575
      %608 = vst.msk [vmem:[%s224] sm:$0xff] %vm257, %v576
      %609 = vst.msk [vmem:[%s224 + $0x8] sm:$0xff] %vm257, %v577
      %610 = vst.msk [vmem:[%s224 + $0x10] sm:$0xff] %vm257, %v578
      %611 = vst.msk [vmem:[%s224 + $0x18] sm:$0xff] %vm257, %v579
      %612 = vst.msk [vmem:[%s224 + $0x20] sm:$0xff] %vm257, %v580
      %613 = vst.msk [vmem:[%s224 + $0x28] sm:$0xff] %vm257, %v581
      %614 = vst.msk [vmem:[%s224 + $0x30] sm:$0xff] %vm257, %v582
      %615 = vst.msk [vmem:[%s224 + $0x38] sm:$0xff] %vm257, %v583
      %616 = vst.msk [vmem:[%s224 + $0x40] sm:$0xff] %vm257, %v584
      %617 = vst.msk [vmem:[%s224 + $0x48] sm:$0xff] %vm257, %v585
      %618 = vst.msk [vmem:[%s224 + $0x50] sm:$0xff] %vm257, %v586
      %619 = vst.msk [vmem:[%s224 + $0x58] sm:$0xff] %vm257, %v587
      %620 = vst.msk [vmem:[%s224 + $0x60] sm:$0xff] %vm257, %v588
      %621 = vst.msk [vmem:[%s224 + $0x68] sm:$0xff] %vm257, %v589
      %622 = vst.msk [vmem:[%s224 + $0x70] sm:$0xff] %vm257, %v590
      %623 = vst.msk [vmem:[%s224 + $0x78] sm:$0xff] %vm257, %v591
      %624 = vst.msk [vmem:[%s224 + $0x80] sm:$0xff] %vm257, %v592
      %625 = vst.msk [vmem:[%s224 + $0x88] sm:$0xff] %vm257, %v593
      %626 = vst.msk [vmem:[%s224 + $0x90] sm:$0xff] %vm257, %v594
      %627 = vst.msk [vmem:[%s224 + $0x98] sm:$0xff] %vm257, %v595
      %628 = vst.msk [vmem:[%s224 + $0xa0] sm:$0xff] %vm257, %v596
      %629 = vst.msk [vmem:[%s224 + $0xa8] sm:$0xff] %vm257, %v597
      %630 = vst.msk [vmem:[%s224 + $0xb0] sm:$0xff] %vm257, %v598
      %631 = vst.msk [vmem:[%s224 + $0xb8] sm:$0xff] %vm257, %v599
      %632 = vst.msk [vmem:[%s224 + $0xc0] sm:$0xff] %vm257, %v600
      %633 = vst.msk [vmem:[%s224 + $0xc8] sm:$0xff] %vm257, %v601
      %634 = vst.msk [vmem:[%s224 + $0xd0] sm:$0xff] %vm257, %v602
      %635 = vst.msk [vmem:[%s224 + $0xd8] sm:$0xff] %vm257, %v603
      %636 = vst.msk [vmem:[%s224 + $0xe0] sm:$0xff] %vm257, %v604
      %637 = vst.msk [vmem:[%s224 + $0xe8] sm:$0xff] %vm257, %v605
      %638 = vst.msk [vmem:[%s224 + $0xf0] sm:$0xff] %vm257, %v606
      %639 = vst.msk [vmem:[%s224 + $0xf8] sm:$0xff] %vm257, %v607
      %p640 = scmp.lt.s32.totalorder %s16, 1
      %s641 = scalar_select %p640, %s16, 1
      %s642 = smul.addr %s641, 32
      %s643 = smul.addr %s642, 8
      %s644 = scalar_lea.vmem %s5, %s643
      // Predicated region
      $region41: #{tpu_custom_call.1} parent=39 // pred_check
        %p645 = pneg %p144
      $region42: #{tpu_custom_call.1} parent=39 // pred_check_branch
        %647 = sbr.rel (%p645) target = $region44
      $region43: #{tpu_custom_call.1} parent=39 // pred_region
        _
      $region44: #{tpu_custom_call.1} parent=39 // pred_fallthru
        _
    $region40: #{tpu_custom_call.1} parent=5 // pred_fallthru
      _
    %p648 = scmp.le.s32.totalorder 2, %s11
    // Predicated region
    $region45: #{tpu_custom_call.1} parent=5 // pred_check
      %p649 = pneg %p648
    $region46: #{tpu_custom_call.1} parent=5 // pred_check_branch
      %651 = sbr.rel (%p649) target = $region48
    $region47: #{tpu_custom_call.1} parent=5 // pred_region
      %s652 = ssub.s32 %s11, 2
      // Predicated region
      $region49: #{tpu_custom_call.1} parent=47 // pred_check
        %p653 = pneg %p150
      $region50: #{tpu_custom_call.1} parent=47 // pred_check_branch
        %655 = sbr.rel (%p653) target = $region52
      $region51: #{tpu_custom_call.1} parent=47 // pred_region
        %p656 = scmp.lt.s32.totalorder %s17, 1
        %s657 = scalar_select %p656, %s17, 1
        %s658 = smul.addr %s657, 32
        %s659 = smul.addr %s658, 8
        %s660 = scalar_lea.vmem %s5, %s659
      $region52: #{tpu_custom_call.1} parent=47 // pred_fallthru
        _
    $region48: #{tpu_custom_call.1} parent=5 // pred_fallthru
      _
  $region6: #{tpu_custom_call.1} parent=0 // loop_footer
    %s15 = sadd.s32 1, %s11
  $region7: #{tpu_custom_call.1} parent=0 // loop_footer_branch
    %10 = sbr.rel target = $region3
  $region8: #{tpu_custom_call.1} parent=0 // loop_exit
    _

</llo_original>
